<compile_context>
chip_gen: v7x
topology: tpu7x:2x2x1
jax: 0.10.0
libtpu: 0.0.40
codegen_flags: <defaults>
</compile_context>

<pallas_src>
import functools

import jax
import jax.numpy as jnp
from jax.experimental import pallas as pl
from jax.experimental.pallas import tpu as pltpu


# ----------------------------------------------------------------------------
# Kernels
# ----------------------------------------------------------------------------
def _conv_bn_relu_kernel(x_ref, w_ref, bias_ref, o_ref):
    # x_ref:    (tm, chi)  pixels x input-channels
    # w_ref:    (chi, tn)  1x1 conv weight tile, BN scale pre-folded
    # bias_ref: (1, tn)    folded BatchNorm bias (f32)
    # o_ref:    (tm, tn)
    y = jnp.dot(x_ref[...], w_ref[...], preferred_element_type=jnp.float32)
    o_ref[...] = jnp.maximum(y + bias_ref[...], 0.0).astype(o_ref.dtype)


def _conv_bn_relu_kernel_ktiled(x_ref, w_ref, bias_ref, o_ref, acc_ref):
    # Same as above but with the contraction (chi) axis tiled on grid axis 2.
    k = pl.program_id(2)

    @pl.when(k == 0)
    def _():
        acc_ref[...] = jnp.zeros_like(acc_ref)

    acc_ref[...] += jnp.dot(x_ref[...], w_ref[...],
                            preferred_element_type=jnp.float32)

    @pl.when(k == pl.num_programs(2) - 1)
    def _():
        o_ref[...] = jnp.maximum(acc_ref[...] + bias_ref[...],
                                 0.0).astype(o_ref.dtype)


# ----------------------------------------------------------------------------
# Tiling / VMEM sizing
# ----------------------------------------------------------------------------
def _vmem_capacity_bytes():
    try:
        return int(pltpu.get_tpu_info().vmem_capacity_bytes)
    except Exception:
        return 64 * 1024 * 1024  # conservative: v7x per-TensorCore VMEM


def _need_bytes(tm, tn, tk, in_b, w_b, out_b, ktiled):
    # Double-buffered x/w/bias/out blocks; bias (1, tn) pads to 8 sublanes;
    # plus the single-buffered f32 accumulator when chi is tiled.
    n = 2 * (tm * tk * in_b + tk * tn * w_b + 8 * tn * 4 + tm * tn * out_b)
    if ktiled:
        n += tm * tn * 4
    return n


def _choose_tiling(M, chi, cho, in_b, w_b, out_b, budget):
    # Row-tile candidates (second-to-last dim: multiple of 8, or full M).
    tms = [t for t in (2048, 1024, 512, 256) if t <= M] or [M]
    # Output-channel tile candidates: prefer collapsing the N grid axis so the
    # folded weight is DMA'd once and stays VMEM-resident across row tiles.
    if cho <= 128:
        tns = [cho]
    else:
        tns = [cho] + [t for t in (512, 256, 128) if t < cho]

    for tn in tns:
        for tm in tms:
            if _need_bytes(tm, tn, chi, in_b, w_b, out_b, False) <= budget:
                return tm, tn, chi, False

    # Fallback: tile the contraction (chi) axis. tk must divide chi and be a
    # multiple of 128 so no out-of-bounds garbage enters the accumulation.
    tks = []
    tk = chi
    while tk % 2 == 0 and (tk // 2) % 128 == 0:
        tk //= 2
        tks.append(tk)
    for tn in tns:
        for tk in tks:
            for tm in tms:
                if _need_bytes(tm, tn, tk, in_b, w_b, out_b, True) <= budget:
                    return tm, tn, tk, True

    raise ValueError(
        f"conv_block: no tiling of (M={M}, chi={chi}, cho={cho}) fits the "
        f"VMEM budget of {budget} bytes; reduce channels or raise the budget.")


# ----------------------------------------------------------------------------
# Row-matmul core: y[m, o] = relu(sum_c x[m, c] * w[c, o] + bias[o])
# ----------------------------------------------------------------------------
def _conv_rows(x_rows, w_mat, bias, *, out_dtype, vmem_budget_bytes=None):
    M, chi = x_rows.shape
    cho = w_mat.shape[1]

    cap = _vmem_capacity_bytes()
    budget = (vmem_budget_bytes if vmem_budget_bytes is not None
              else int(cap * 0.75))

    in_b = jnp.dtype(x_rows.dtype).itemsize
    w_b = jnp.dtype(w_mat.dtype).itemsize
    out_b = jnp.dtype(out_dtype).itemsize

    tm, tn, tk, ktiled = _choose_tiling(M, chi, cho, in_b, w_b, out_b, budget)

    # Guarantee >= 2 tiles along a parallel grid axis so both v7x TensorCores
    # get work (negligible extra per-step overhead on single-core parts).
    if pl.cdiv(M, tm) * pl.cdiv(cho, tn) < 2 and tm >= 512 and M > tm // 2:
        tm //= 2

    need = _need_bytes(tm, tn, tk, in_b, w_b, out_b, ktiled)
    vmem_limit = int(min(cap, max(need * 6 // 5 + (1 << 20), 16 << 20)))

    bias2d = bias.astype(jnp.float32).reshape(1, cho)

    if not ktiled:
        grid = (pl.cdiv(M, tm), pl.cdiv(cho, tn))
        return pl.pallas_call(
            _conv_bn_relu_kernel,
            out_shape=jax.ShapeDtypeStruct((M, cho), out_dtype),
            grid_spec=pltpu.PrefetchScalarGridSpec(
                num_scalar_prefetch=0,
                grid=grid,
                in_specs=[
                    pl.BlockSpec((tm, chi), lambda i, j: (i, 0)),
                    pl.BlockSpec((chi, tn), lambda i, j: (0, j)),
                    pl.BlockSpec((1, tn), lambda i, j: (0, j)),
                ],
                out_specs=pl.BlockSpec((tm, tn), lambda i, j: (i, j)),
            ),
            compiler_params=pltpu.CompilerParams(
                dimension_semantics=("parallel", "parallel"),
                vmem_limit_bytes=vmem_limit,
            ),
        )(x_rows, w_mat, bias2d)

    grid = (pl.cdiv(M, tm), pl.cdiv(cho, tn), chi // tk)
    return pl.pallas_call(
        _conv_bn_relu_kernel_ktiled,
        out_shape=jax.ShapeDtypeStruct((M, cho), out_dtype),
        grid_spec=pltpu.PrefetchScalarGridSpec(
            num_scalar_prefetch=0,
            grid=grid,
            in_specs=[
                pl.BlockSpec((tm, tk), lambda i, j, k: (i, k)),
                pl.BlockSpec((tk, tn), lambda i, j, k: (k, j)),
                pl.BlockSpec((1, tn), lambda i, j, k: (0, j)),
            ],
            out_specs=pl.BlockSpec((tm, tn), lambda i, j, k: (i, j)),
            scratch_shapes=[pltpu.VMEM((tm, tn), jnp.float32)],
        ),
        compiler_params=pltpu.CompilerParams(
            dimension_semantics=("parallel", "parallel", "arbitrary"),
            vmem_limit_bytes=vmem_limit,
        ),
    )(x_rows, w_mat, bias2d)


# ----------------------------------------------------------------------------
# Public wrappers
# ----------------------------------------------------------------------------
@functools.partial(jax.jit,
                   static_argnames=("eps", "compute_dtype",
                                    "vmem_budget_bytes"))
def conv_block_nhwc(x_nhwc, conv_w, bn_gamma, bn_beta, bn_mean, bn_var, *,
                    eps=1e-5, compute_dtype=None, vmem_budget_bytes=None):
    """Channels-last core: (N, H, W, chi) -> (N, H, W, cho). No transposes."""
    N, H, W, chi = x_nhwc.shape
    cho = conv_w.shape[0]

    # Fold BatchNorm (inference, running stats) into conv weight + bias.
    scale = bn_gamma.astype(jnp.float32) / jnp.sqrt(
        bn_var.astype(jnp.float32) + eps)                     # (cho,)
    bias = bn_beta.astype(jnp.float32) - bn_mean.astype(jnp.float32) * scale
    w_mat = conv_w.reshape(cho, chi).T.astype(jnp.float32) * scale[None, :]

    x_rows = x_nhwc.reshape(N * H * W, chi)
    if compute_dtype is not None:
        # Under jit the cast fuses with the reshape; bf16 in *and* out halves
        # the dominant HBM traffic (biggest win on v5e's slow HBM).
        x_rows = x_rows.astype(compute_dtype)
        w_mat = w_mat.astype(compute_dtype)
        out_dtype = compute_dtype
    else:
        out_dtype = x_nhwc.dtype

    out_rows = _conv_rows(x_rows, w_mat, bias, out_dtype=out_dtype,
                          vmem_budget_bytes=vmem_budget_bytes)
    return out_rows.reshape(N, H, W, cho)


@functools.partial(jax.jit,
                   static_argnames=("eps", "compute_dtype",
                                    "vmem_budget_bytes"))
def conv_block(x_nchw, conv_w, bn_gamma, bn_beta, bn_mean, bn_var, *,
               eps=1e-5, compute_dtype=None, vmem_budget_bytes=None):
    """PyTorch-layout wrapper: (N, chi, H, W) -> (N, cho, H, W)."""
    # TODO(synk): keep activations NHWC end-to-end in the full model so these
    # two full-HBM-round-trip transposes disappear from the hot path.
    x_nhwc = jnp.transpose(x_nchw, (0, 2, 3, 1))
    out_nhwc = conv_block_nhwc(x_nhwc, conv_w, bn_gamma, bn_beta, bn_mean,
                               bn_var, eps=eps, compute_dtype=compute_dtype,
                               vmem_budget_bytes=vmem_budget_bytes)
    return jnp.transpose(out_nhwc, (0, 3, 1, 2))


if __name__ == "__main__":
    key = jax.random.PRNGKey(0)
    kx, kw, kg, kb, km, kv = jax.random.split(key, 6)

    N, chi, cho, Hh, Ww = 2, 4, 8, 16, 16

    x = jax.random.normal(kx, (N, chi, Hh, Ww), dtype=jnp.float32)
    conv_w = jax.random.normal(kw, (cho, chi, 1, 1), dtype=jnp.float32) * 0.1
    bn_gamma = 1.0 + 0.1 * jax.random.normal(kg, (cho,), dtype=jnp.float32)
    bn_beta = 0.1 * jax.random.normal(kb, (cho,), dtype=jnp.float32)
    bn_mean = 0.05 * jax.random.normal(km, (cho,), dtype=jnp.float32)
    bn_var = jnp.abs(jax.random.normal(kv, (cho,), dtype=jnp.float32)) + 0.5

    # Pure-JAX reference (1x1 conv + BN eval + ReLU), exactly the PyTorch math.
    eps = 1e-5
    w_ref = conv_w.reshape(cho, chi)
    y_ref = jnp.einsum("nchw,oc->nohw", x, w_ref)
    s_ref = (bn_gamma / jnp.sqrt(bn_var + eps)).reshape(1, cho, 1, 1)
    b_ref = (bn_beta - bn_mean * bn_gamma / jnp.sqrt(bn_var + eps)
             ).reshape(1, cho, 1, 1)
    y_ref = jnp.maximum(y_ref * s_ref + b_ref, 0.0)

    # Default f32 path: matches PyTorch semantics to tight tolerance.
    out_f32 = conv_block(x, conv_w, bn_gamma, bn_beta, bn_mean, bn_var)
    out_f32 = jax.block_until_ready(out_f32)
    assert out_f32.shape == (N, cho, Hh, Ww)
    assert jnp.allclose(out_f32, y_ref, atol=1e-5, rtol=1e-5)

    # Bandwidth-saving bf16 path (f32 MXU accumulation, bf16 in and out).
    out_bf16 = conv_block(x, conv_w, bn_gamma, bn_beta, bn_mean, bn_var,
                          compute_dtype=jnp.bfloat16)
    out_bf16 = jax.block_until_ready(out_bf16)
    assert out_bf16.dtype == jnp.bfloat16
    assert jnp.allclose(out_bf16.astype(jnp.float32), y_ref,
                        atol=2e-2, rtol=2e-2)

    print("KERNEL_OK")
</pallas_src>

<mosaic_0001>
module attributes {stable_mosaic.version = 11 : i64} {
  func.func @_conv_bn_relu_kernel(%arg0: i32, %arg1: i32, %arg2: memref<256x4xf32, #tpu.memory_space<vmem>>, %arg3: memref<4x8xf32, #tpu.memory_space<vmem>>, %arg4: memref<1x8xf32, #tpu.memory_space<vmem>>, %arg5: memref<256x8xf32, #tpu.memory_space<vmem>>) attributes {dimension_semantics = [#tpu.dimension_semantics<parallel>, #tpu.dimension_semantics<parallel>], iteration_bounds = array<i64: 2, 1>, scalar_prefetch = 0 : i64, scratch_operands = 0 : i64, tpu.core_type = #tpu.core_type<tc>, window_params = [{transform_indices = @transform_0, window_bounds = array<i64: 256, 4>}, {transform_indices = @transform_1, window_bounds = array<i64: 4, 8>}, {transform_indices = @transform_2, window_bounds = array<i64: 1, 8>}, {transform_indices = @transform_3, window_bounds = array<i64: 256, 8>}]} {
    %c0 = arith.constant 0 : index
    %c0_0 = arith.constant 0 : index
    %0 = vector.load %arg2[%c0, %c0_0] : memref<256x4xf32, #tpu.memory_space<vmem>>, vector<256x4xf32>
    %c0_1 = arith.constant 0 : index
    %c0_2 = arith.constant 0 : index
    %1 = vector.load %arg3[%c0_1, %c0_2] : memref<4x8xf32, #tpu.memory_space<vmem>>, vector<4x8xf32>
    %cst = arith.constant dense<0.000000e+00> : vector<256x8xf32>
    %2 = tpu.matmul %0, %1, %cst {dimension_numbers = #tpu.dot_dimension_numbers<[1], [0], [0], [1], [0, 0, 1, 1], [], []>} : vector<256x4xf32>, vector<4x8xf32>, vector<256x8xf32> -> vector<256x8xf32>
    %c0_3 = arith.constant 0 : index
    %c0_4 = arith.constant 0 : index
    %3 = vector.load %arg4[%c0_3, %c0_4] : memref<1x8xf32, #tpu.memory_space<vmem>>, vector<1x8xf32>
    %4 = vector.broadcast %3 : vector<1x8xf32> to vector<256x8xf32>
    %5 = arith.addf %2, %4 : vector<256x8xf32>
    %cst_5 = arith.constant 0.000000e+00 : f32
    %6 = vector.broadcast %cst_5 : f32 to vector<256x8xf32>
    %7 = arith.maximumf %5, %6 : vector<256x8xf32>
    %c0_6 = arith.constant 0 : index
    %c0_7 = arith.constant 0 : index
    %8 = vector.load %arg5[%c0_6, %c0_7] : memref<256x8xf32, #tpu.memory_space<vmem>>, vector<256x8xf32>
    tpu.vector_store %arg5[%c0_6, %c0_7], %7 {strides = array<i32>} : memref<256x8xf32, #tpu.memory_space<vmem>>, vector<256x8xf32>,
    return
  }
  func.func @transform_0(%arg0: i32, %arg1: i32) -> (i32, i32) {
    %c0_i32 = arith.constant 0 : i32
    %c0_i32_0 = arith.constant 0 : i32
    return %arg0, %c0_i32 : i32, i32
  }
  func.func @transform_1(%arg0: i32, %arg1: i32) -> (i32, i32) {
    %c0_i32 = arith.constant 0 : i32
    %c0_i32_0 = arith.constant 0 : i32
    return %c0_i32, %arg1 : i32, i32
  }
  func.func @transform_2(%arg0: i32, %arg1: i32) -> (i32, i32) {
    %c0_i32 = arith.constant 0 : i32
    %c0_i32_0 = arith.constant 0 : i32
    return %c0_i32, %arg1 : i32, i32
  }
  func.func @transform_3(%arg0: i32, %arg1: i32) -> (i32, i32) {
    %c0_i32 = arith.constant 0 : i32
    return %arg0, %arg1 : i32, i32
  }
}

</mosaic_0001>

<llo_original>
// kernel: conv_block_nhwc.1
$region0: #{conv_block_nhwc.1}
  #allocation0 [shape = 'u32[]', space=smem, size = 0x4, offset = 0x4, fixed_abs, tag = 'smem constant byte address 0x4 - core index']
  #allocation1 [shape = 'u32[144,128]{1,0:T(1,128)}', space=vmem, size = 0x12000, scoped, tag = 'internal scratch']
  %s0 = inlined_call_operand.vmem [shape: f32[512,4], index: 0, kind: input, shape index: {}]
  %s1 = inlined_call_operand.vmem [shape: f32[4,8], index: 1, kind: input, shape index: {}]
  %s2 = inlined_call_operand.vmem [shape: f32[1,8], index: 2, kind: input, shape index: {}]
  %s3 = inlined_call_operand.vmem [shape: f32[512,8], index: 3, kind: output, shape index: {}]
  %s4 = sld [smem:[#allocation0]]
  $region45: #{conv_block_nhwc.1} parent=0
    _
  %s6 = ssub.s32 1, %s4
  %s7 = scalar_select 0, %s6, %s4
  loop: start=0, step=1, limit=4
  $region2: #{conv_block_nhwc.1} parent=0 // loop_pre_header
    _
  $region3: #{conv_block_nhwc.1} parent=0 // loop_header
    %s9 = sphi 0, %s13
    %p10 = scmp.ge.s32.totalorder %s9, 4
    %s16 = sphi 0, %s28
    %s17 = sphi 0, %s24
    %s18 = sphi 0, %s16
    %s19 = sphi 0, %s17
    %s20 = sphi 0, %s18
    %s21 = sphi 0, %s19
    %s31 = sphi 0, %s33
    %s34 = sphi 0, %s31
    %s35 = sphi 0, %s34
    %s51 = sphi 0, %s35
    %s57 = sphi 0, %s59
    %s60 = sphi 0, %s57
    %s61 = sphi 0, %s60
    %s77 = sphi 0, %s61
    %s83 = sphi 0, %s85
    %s86 = sphi 0, %s83
    %s87 = sphi 0, %s86
    %s103 = sphi 0, %s87
    %s111 = sphi 0, %s113
    %s114 = sphi 0, %s111
    %s115 = sphi 0, %s114
    %s131 = sphi 0, %s115
  $region4: #{conv_block_nhwc.1} parent=0 // loop_header_branch
    %12 = sbr.rel (%p10) target = $region8
  $region5: #{conv_block_nhwc.1} parent=0 // loop_body
    %s14 = ssub.s32 %s9, 1
    %s15 = ssub.s32 %s9, 2
    %s22 = sadd.s32 1, %s17
    %p23 = scmp.ge.s32.totalorder %s22, 1
    %s24 = scalar_select %p23, 0, %s22
    %s25 = sadd.s32 1, %s16
    %s26 = scalar_select %p23, %s25, %s16
    %p27 = scmp.ge.s32.totalorder %s26, 2
    %s28 = scalar_select %p27, 0, %s26
    %s29 = ssub.s32 %s16, %s28
    %p30 = scmp.eq.s32.totalorder %s29, 0
    %s32 = sadd.s32 %s31, 1
    %s33 = scalar_select %p30, %s31, %s32
    %p36 = pneg %p30
    %p37 = scmp.eq.s32.totalorder %s9, 1
    %p38 = por %p36, %p37
    %p39 = scmp.ne.s32.totalorder %s31, %s34
    %p40 = scmp.eq.s32.totalorder %s9, 0
    %p41 = por %p39, %p40
    %p42 = scmp.ne.s32.totalorder %s31, %s34
    %p43 = scmp.eq.s32.totalorder %s14, 1
    %p44 = por %p42, %p43
    %p45 = scmp.ne.s32.totalorder %s34, %s35
    %p46 = scmp.eq.s32.totalorder %s14, 0
    %p47 = por %p45, %p46
    %p48 = scmp.ne.s32.totalorder %s34, %s35
    %p49 = scmp.eq.s32.totalorder %s15, 1
    %p50 = por %p48, %p49
    %p52 = scmp.ne.s32.totalorder %s35, %s51
    %p53 = scmp.eq.s32.totalorder %s15, 0
    %p54 = por %p52, %p53
    %s55 = ssub.s32 %s17, %s24
    %p56 = scmp.eq.s32.totalorder %s55, 0
    %s58 = sadd.s32 %s57, 1
    %s59 = scalar_select %p56, %s57, %s58
    %p62 = pneg %p56
    %p63 = scmp.eq.s32.totalorder %s9, 1
    %p64 = por %p62, %p63
    %p65 = scmp.ne.s32.totalorder %s57, %s60
    %p66 = scmp.eq.s32.totalorder %s9, 0
    %p67 = por %p65, %p66
    %p68 = scmp.ne.s32.totalorder %s57, %s60
    %p69 = scmp.eq.s32.totalorder %s14, 1
    %p70 = por %p68, %p69
    %p71 = scmp.ne.s32.totalorder %s60, %s61
    %p72 = scmp.eq.s32.totalorder %s14, 0
    %p73 = por %p71, %p72
    %p74 = scmp.ne.s32.totalorder %s60, %s61
    %p75 = scmp.eq.s32.totalorder %s15, 1
    %p76 = por %p74, %p75
    %p78 = scmp.ne.s32.totalorder %s61, %s77
    %p79 = scmp.eq.s32.totalorder %s15, 0
    %p80 = por %p78, %p79
    %s81 = ssub.s32 %s17, %s24
    %p82 = scmp.eq.s32.totalorder %s81, 0
    %s84 = sadd.s32 %s83, 1
    %s85 = scalar_select %p82, %s83, %s84
    %p88 = pneg %p82
    %p89 = scmp.eq.s32.totalorder %s9, 1
    %p90 = por %p88, %p89
    %p91 = scmp.ne.s32.totalorder %s83, %s86
    %p92 = scmp.eq.s32.totalorder %s9, 0
    %p93 = por %p91, %p92
    %p94 = scmp.ne.s32.totalorder %s83, %s86
    %p95 = scmp.eq.s32.totalorder %s14, 1
    %p96 = por %p94, %p95
    %p97 = scmp.ne.s32.totalorder %s86, %s87
    %p98 = scmp.eq.s32.totalorder %s14, 0
    %p99 = por %p97, %p98
    %p100 = scmp.ne.s32.totalorder %s86, %s87
    %p101 = scmp.eq.s32.totalorder %s15, 1
    %p102 = por %p100, %p101
    %p104 = scmp.ne.s32.totalorder %s87, %s103
    %p105 = scmp.eq.s32.totalorder %s15, 0
    %p106 = por %p104, %p105
    %s107 = ssub.s32 %s16, %s28
    %s108 = ssub.s32 %s17, %s24
    %s109 = sor.u32 %s107, %s108
    %p110 = scmp.eq.s32.totalorder %s109, 0
    %s112 = sadd.s32 %s111, 1
    %s113 = scalar_select %p110, %s111, %s112
    %p116 = pneg %p110
    %p117 = scmp.eq.s32.totalorder %s9, 1
    %p118 = por %p116, %p117
    %p119 = scmp.ne.s32.totalorder %s111, %s114
    %p120 = scmp.eq.s32.totalorder %s9, 0
    %p121 = por %p119, %p120
    %p122 = scmp.ne.s32.totalorder %s111, %s114
    %p123 = scmp.eq.s32.totalorder %s14, 1
    %p124 = por %p122, %p123
    %p125 = scmp.ne.s32.totalorder %s114, %s115
    %p126 = scmp.eq.s32.totalorder %s14, 0
    %p127 = por %p125, %p126
    %p128 = scmp.ne.s32.totalorder %s114, %s115
    %p129 = scmp.eq.s32.totalorder %s15, 1
    %p130 = por %p128, %p129
    %p132 = scmp.ne.s32.totalorder %s115, %s131
    %p133 = scmp.eq.s32.totalorder %s15, 0
    %p134 = por %p132, %p133
    %p135 = scmp.le.s32.totalorder 1, %s9
    %p136 = scmp.lt.s32.totalorder %s9, 3
    %p137 = pnand %p135, %p136
    %p138 = pneg %p137
    // Predicated region
    $region9: #{conv_block_nhwc.1} parent=5 // pred_check
      _
    $region10: #{conv_block_nhwc.1} parent=5 // pred_check_branch
      %140 = sbr.rel (%p137) target = $region12
    $region11: #{conv_block_nhwc.1} parent=5 // pred_region
      %s141 = ssub.s32 %s9, 1
      // Predicated region
      $region13: #{conv_block_nhwc.1} parent=11 // pred_check
        %p142 = pneg %p73
      $region14: #{conv_block_nhwc.1} parent=11 // pred_check_branch
        %144 = sbr.rel (%p142) target = $region16
      $region15: #{conv_block_nhwc.1} parent=11 // pred_region
        %p145 = scmp.lt.s32.totalorder %s19, 0
        %s146 = scalar_select %p145, %s19, 0
        %s147 = smul.addr %s146, 4
        %s148 = scalar_lea.vmem %s1, %s147
      $region16: #{conv_block_nhwc.1} parent=11 // pred_fallthru
        _
      // Predicated region
      $region17: #{conv_block_nhwc.1} parent=11 // pred_check
        %p149 = pneg %p99
      $region18: #{conv_block_nhwc.1} parent=11 // pred_check_branch
        %151 = sbr.rel (%p149) target = $region20
      $region19: #{conv_block_nhwc.1} parent=11 // pred_region
        %p152 = scmp.lt.s32.totalorder %s19, 0
        %s153 = scalar_select %p152, %s19, 0
        %s154 = scalar_lea.vmem %s2, %s153
      $region20: #{conv_block_nhwc.1} parent=11 // pred_fallthru
        _
    $region12: #{conv_block_nhwc.1} parent=5 // pred_fallthru
      _
    %p155 = scmp.lt.s32.totalorder %s9, 2
    // Predicated region
    $region21: #{conv_block_nhwc.1} parent=5 // pred_check
      %p156 = pneg %p155
    $region22: #{conv_block_nhwc.1} parent=5 // pred_check_branch
      %158 = sbr.rel (%p156) target = $region24
    $region23: #{conv_block_nhwc.1} parent=5 // pred_region
      // Predicated region
      $region25: #{conv_block_nhwc.1} parent=23 // pred_check
        %p159 = pneg %p41
      $region26: #{conv_block_nhwc.1} parent=23 // pred_check_branch
        %161 = sbr.rel (%p159) target = $region28
      $region27: #{conv_block_nhwc.1} parent=23 // pred_region
        %s162 = smul.u32 32, %s16
        %p163 = scmp.lt.s32.totalorder %s162, 63
        %s164 = scalar_select %p163, %s162, 63
        %s165 = smul.addr %s164, 8
        %s166 = scalar_lea.vmem %s0, %s165
        %s167 = smul.u32 32, %s16
      $region28: #{conv_block_nhwc.1} parent=23 // pred_fallthru
        _
    $region24: #{conv_block_nhwc.1} parent=5 // pred_fallthru
      _
    %p168 = scmp.le.s32.totalorder 1, %s9
    %p169 = scmp.lt.s32.totalorder %s9, 3
    %p170 = pnand %p168, %p169
    %p171 = pneg %p170
    // Predicated region
    $region29: #{conv_block_nhwc.1} parent=5 // pred_check
      _
    $region30: #{conv_block_nhwc.1} parent=5 // pred_check_branch
      %173 = sbr.rel (%p170) target = $region32
    $region31: #{conv_block_nhwc.1} parent=5 // pred_region
      %s174 = ssub.s32 %s9, 1
      %s175 = smul.u32 32, %s18
      %p176 = scmp.lt.s32.totalorder %s175, 63
      %s177 = scalar_select %p176, %s175, 63
      %s178 = smul.addr %s177, 8
      %s179 = scalar_lea.vmem %s0, %s178
      %p180 = pneg %p47
      %p181 = pneg %p44
      %p182 = scmp.lt.s32.totalorder %s19, 0
      %s183 = scalar_select %p182, %s19, 0
      %s184 = smul.addr %s183, 4
      %s185 = scalar_lea.vmem %s1, %s184
      %p186 = pneg %p73
      %p187 = pneg %p70
      %p188 = scmp.lt.s32.totalorder %s19, 0
      %s189 = scalar_select %p188, %s19, 0
      %s190 = scalar_lea.vmem %s2, %s189
      %p191 = pneg %p99
      %p192 = pneg %p96
      %p193 = pneg %p127
      %p194 = pneg %p124
      %s195 = smul.u32 32, %s18
      %p196 = scmp.lt.s32.totalorder %s195, 63
      %s197 = scalar_select %p196, %s195, 63
      %p198 = scmp.lt.s32.totalorder %s19, 0
      %s199 = scalar_select %p198, %s19, 0
      %s200 = sadd.s32 %s199, %s197
      %s201 = smul.addr %s200, 8
      %s202 = scalar_lea.vmem %s3, %s201
      %s203 = smul.u32 32, %s18
      %p204 = scmp.lt.s32.totalorder %s203, 63
      %s205 = scalar_select %p204, %s203, 63
      %s206 = smul.addr %s205, 8
      %s207 = scalar_lea.vmem %s0, %s206
      %s208 = smul.u32 32, %s18
      %p209 = scmp.lt.s32.totalorder %s19, 0
      %s210 = scalar_select %p209, %s19, 0
      %s211 = smul.addr %s210, 4
      %s212 = scalar_lea.vmem %s1, %s211
      %p213 = scmp.lt.s32.totalorder %s19, 0
      %s214 = scalar_select %p213, %s19, 0
      %s215 = scalar_lea.vmem %s2, %s214
      %s216 = smul.u32 32, %s18
      %p217 = scmp.lt.s32.totalorder %s216, 63
      %s218 = scalar_select %p217, %s216, 63
      %p219 = scmp.lt.s32.totalorder %s19, 0
      %s220 = scalar_select %p219, %s19, 0
      %s221 = sadd.s32 %s220, %s218
      %s222 = smul.addr %s221, 8
      %s223 = scalar_lea.vmem %s3, %s222
      %s224 = smul.u32 32, %s18
      %v225 = vld [vmem:[%s207] sm:$0xff]
      %v226 = vld [vmem:[%s207 + $0x8] sm:$0xff]
      %v227 = vld [vmem:[%s207 + $0x10] sm:$0xff]
      %v228 = vld [vmem:[%s207 + $0x18] sm:$0xff]
      %v229 = vld [vmem:[%s207 + $0x20] sm:$0xff]
      %v230 = vld [vmem:[%s207 + $0x28] sm:$0xff]
      %v231 = vld [vmem:[%s207 + $0x30] sm:$0xff]
      %v232 = vld [vmem:[%s207 + $0x38] sm:$0xff]
      %v233 = vld [vmem:[%s207 + $0x40] sm:$0xff]
      %v234 = vld [vmem:[%s207 + $0x48] sm:$0xff]
      %v235 = vld [vmem:[%s207 + $0x50] sm:$0xff]
      %v236 = vld [vmem:[%s207 + $0x58] sm:$0xff]
      %v237 = vld [vmem:[%s207 + $0x60] sm:$0xff]
      %v238 = vld [vmem:[%s207 + $0x68] sm:$0xff]
      %v239 = vld [vmem:[%s207 + $0x70] sm:$0xff]
      %v240 = vld [vmem:[%s207 + $0x78] sm:$0xff]
      %v241 = vld [vmem:[%s207 + $0x80] sm:$0xff]
      %v242 = vld [vmem:[%s207 + $0x88] sm:$0xff]
      %v243 = vld [vmem:[%s207 + $0x90] sm:$0xff]
      %v244 = vld [vmem:[%s207 + $0x98] sm:$0xff]
      %v245 = vld [vmem:[%s207 + $0xa0] sm:$0xff]
      %v246 = vld [vmem:[%s207 + $0xa8] sm:$0xff]
      %v247 = vld [vmem:[%s207 + $0xb0] sm:$0xff]
      %v248 = vld [vmem:[%s207 + $0xb8] sm:$0xff]
      %v249 = vld [vmem:[%s207 + $0xc0] sm:$0xff]
      %v250 = vld [vmem:[%s207 + $0xc8] sm:$0xff]
      %v251 = vld [vmem:[%s207 + $0xd0] sm:$0xff]
      %v252 = vld [vmem:[%s207 + $0xd8] sm:$0xff]
      %v253 = vld [vmem:[%s207 + $0xe0] sm:$0xff]
      %v254 = vld [vmem:[%s207 + $0xe8] sm:$0xff]
      %v255 = vld [vmem:[%s207 + $0xf0] sm:$0xff]
      %v256 = vld [vmem:[%s207 + $0xf8] sm:$0xff]
      %v257 = vld [vmem:[%s212] sm:$0xf]
      %v258 = vld [vmem:[%s215] sm:$0x1]
      %v260 = vlaneseq
      %v261 = vshrl.u32 %v260, 7
      %v262 = vsub.s32 0, %v261
      %v263 = vrot.slane %v258, %v262
      %vm265 = vcmask 31744
      %v267 = vsel %vm265, %v225, 0
      %v270 = vsel %vm265, %v226, 0
      %v273 = vsel %vm265, %v227, 0
      %v276 = vsel %vm265, %v228, 0
      %v279 = vsel %vm265, %v229, 0
      %v282 = vsel %vm265, %v230, 0
      %v285 = vsel %vm265, %v231, 0
      %v288 = vsel %vm265, %v232, 0
      %v291 = vsel %vm265, %v233, 0
      %v294 = vsel %vm265, %v234, 0
      %v297 = vsel %vm265, %v235, 0
      %v300 = vsel %vm265, %v236, 0
      %v303 = vsel %vm265, %v237, 0
      %v306 = vsel %vm265, %v238, 0
      %v309 = vsel %vm265, %v239, 0
      %v312 = vsel %vm265, %v240, 0
      %v315 = vsel %vm265, %v241, 0
      %v318 = vsel %vm265, %v242, 0
      %v321 = vsel %vm265, %v243, 0
      %v324 = vsel %vm265, %v244, 0
      %v327 = vsel %vm265, %v245, 0
      %v330 = vsel %vm265, %v246, 0
      %v333 = vsel %vm265, %v247, 0
      %v336 = vsel %vm265, %v248, 0
      %v339 = vsel %vm265, %v249, 0
      %v342 = vsel %vm265, %v250, 0
      %v345 = vsel %vm265, %v251, 0
      %v348 = vsel %vm265, %v252, 0
      %v351 = vsel %vm265, %v253, 0
      %v354 = vsel %vm265, %v254, 0
      %v357 = vsel %vm265, %v255, 0
      %v360 = vsel %vm265, %v256, 0
      %vm362 = vcmask 1043456
      %v364 = vsel %vm362, %v257, 0
      %366 = vmatprep.subr.mxu0 0.0
      %367 = vmatpush1.msra.mxu0 %v364
      %368 = vmatprep.subr.mxu0 0.0
      %369 = vmatpush1.msra.mxu0 0.0
      %370 = vmatprep.subr.mxu0 0.0
      %371 = vmatpush1.msra.mxu0 0.0
      %372 = vmatprep.subr.mxu0 0.0
      %373 = vmatpush1.msra.mxu0 0.0
      %374 = vmatprep.subr.mxu0 0.0
      %375 = vmatpush1.msra.mxu0 0.0
      %376 = vmatprep.subr.mxu0 0.0
      %377 = vmatpush1.msra.mxu0 0.0
      %378 = vmatprep.subr.mxu0 0.0
      %379 = vmatpush1.msra.mxu0 0.0
      %380 = vmatprep.subr.mxu0 0.0
      %381 = vmatpush1.msra.mxu0 0.0
      %382 = vmatprep.subr.mxu0 0.0
      %383 = vmatpush1.msra.mxu0 0.0
      %384 = vmatprep.subr.mxu0 0.0
      %385 = vmatpush1.msra.mxu0 0.0
      %386 = vmatprep.subr.mxu0 0.0
      %387 = vmatpush1.msra.mxu0 0.0
      %388 = vmatprep.subr.mxu0 0.0
      %389 = vmatpush1.msra.mxu0 0.0
      %390 = vmatprep.subr.mxu0 0.0
      %391 = vmatpush1.msra.mxu0 0.0
      %392 = vmatprep.subr.mxu0 0.0
      %393 = vmatpush1.msra.mxu0 0.0
      %394 = vmatprep.subr.mxu0 0.0
      %395 = vmatpush1.msra.mxu0 0.0
      %396 = vmatprep.subr.mxu0 0.0
      %397 = vmatpush1.msra.mxu0 0.0
      %398 = vmatprep.subr.mxu0 0.0
      %399 = vmatpush1.msra.mxu0 0.0
      %400 = vmatprep.subr.mxu0 0.0
      %401 = vmatpush1.msra.mxu0 0.0
      %402 = vmatprep.subr.mxu0 0.0
      %403 = vmatpush1.msra.mxu0 0.0
      %404 = vmatprep.subr.mxu0 0.0
      %405 = vmatpush1.msra.mxu0 0.0
      %406 = vmatprep.subr.mxu0 0.0
      %407 = vmatpush1.msra.mxu0 0.0
      %408 = vmatprep.subr.mxu0 0.0
      %409 = vmatpush1.msra.mxu0 0.0
      %410 = vmatprep.subr.mxu0 0.0
      %411 = vmatpush1.msra.mxu0 0.0
      %412 = vmatprep.subr.mxu0 0.0
      %413 = vmatpush1.msra.mxu0 0.0
      %414 = vmatprep.subr.mxu0 0.0
      %415 = vmatpush1.msra.mxu0 0.0
      %416 = vmatprep.subr.mxu0 0.0
      %417 = vmatpush1.msra.mxu0 0.0
      %418 = vmatprep.subr.mxu0 0.0
      %419 = vmatpush1.msra.mxu0 0.0
      %420 = vmatprep.subr.mxu0 0.0
      %421 = vmatpush1.msra.mxu0 0.0
      %422 = vmatprep.subr.mxu0 0.0
      %423 = vmatpush1.msra.mxu0 0.0
      %424 = vmatprep.subr.mxu0 0.0
      %425 = vmatpush1.msra.mxu0 0.0
      %426 = vmatprep.subr.mxu0 0.0
      %427 = vmatpush1.msra.mxu0 0.0
      %428 = vmatprep.subr.mxu0 0.0
      %429 = vmatpush1.msra.mxu0 0.0
      %430 = vmatprep.mubr.f32.mxu0 0.0
      %431 = vmatmul.mubr.f32.gmra.mrb[0].mxu0 %v267
      %v432 = vpop.f32.mrb[0].mxu0
      %v433 = vadd.f32 %v263, %v432
      %v434 = vpop.f32.mrb[0].mxu0
      %435 = vmatprep.mubr.f32.mxu0 0.0
      %436 = vmatmul.mubr.f32.gmra.mrb[0].mxu0 %v270
      %v437 = vpop.f32.mrb[0].mxu0
      %v438 = vadd.f32 %v263, %v437
      %v439 = vpop.f32.mrb[0].mxu0
      %440 = vmatprep.mubr.f32.mxu0 0.0
      %441 = vmatmul.mubr.f32.gmra.mrb[0].mxu0 %v273
      %v442 = vpop.f32.mrb[0].mxu0
      %v443 = vadd.f32 %v263, %v442
      %v444 = vpop.f32.mrb[0].mxu0
      %445 = vmatprep.mubr.f32.mxu0 0.0
      %446 = vmatmul.mubr.f32.gmra.mrb[0].mxu0 %v276
      %v447 = vpop.f32.mrb[0].mxu0
      %v448 = vadd.f32 %v263, %v447
      %v449 = vpop.f32.mrb[0].mxu0
      %450 = vmatprep.mubr.f32.mxu0 0.0
      %451 = vmatmul.mubr.f32.gmra.mrb[0].mxu0 %v279
      %v452 = vpop.f32.mrb[0].mxu0
      %v453 = vadd.f32 %v263, %v452
      %v454 = vpop.f32.mrb[0].mxu0
      %455 = vmatprep.mubr.f32.mxu0 0.0
      %456 = vmatmul.mubr.f32.gmra.mrb[0].mxu0 %v282
      %v457 = vpop.f32.mrb[0].mxu0
      %v458 = vadd.f32 %v263, %v457
      %v459 = vpop.f32.mrb[0].mxu0
      %460 = vmatprep.mubr.f32.mxu0 0.0
      %461 = vmatmul.mubr.f32.gmra.mrb[0].mxu0 %v285
      %v462 = vpop.f32.mrb[0].mxu0
      %v463 = vadd.f32 %v263, %v462
      %v464 = vpop.f32.mrb[0].mxu0
      %465 = vmatprep.mubr.f32.mxu0 0.0
      %466 = vmatmul.mubr.f32.gmra.mrb[0].mxu0 %v288
      %v467 = vpop.f32.mrb[0].mxu0
      %v468 = vadd.f32 %v263, %v467
      %v469 = vpop.f32.mrb[0].mxu0
      %470 = vmatprep.mubr.f32.mxu0 0.0
      %471 = vmatmul.mubr.f32.gmra.mrb[0].mxu0 %v291
      %v472 = vpop.f32.mrb[0].mxu0
      %v473 = vadd.f32 %v263, %v472
      %v474 = vpop.f32.mrb[0].mxu0
      %475 = vmatprep.mubr.f32.mxu0 0.0
      %476 = vmatmul.mubr.f32.gmra.mrb[0].mxu0 %v294
      %v477 = vpop.f32.mrb[0].mxu0
      %v478 = vadd.f32 %v263, %v477
      %v479 = vpop.f32.mrb[0].mxu0
      %480 = vmatprep.mubr.f32.mxu0 0.0
      %481 = vmatmul.mubr.f32.gmra.mrb[0].mxu0 %v297
      %v482 = vpop.f32.mrb[0].mxu0
      %v483 = vadd.f32 %v263, %v482
      %v484 = vpop.f32.mrb[0].mxu0
      %485 = vmatprep.mubr.f32.mxu0 0.0
      %486 = vmatmul.mubr.f32.gmra.mrb[0].mxu0 %v300
      %v487 = vpop.f32.mrb[0].mxu0
      %v488 = vadd.f32 %v263, %v487
      %v489 = vpop.f32.mrb[0].mxu0
      %490 = vmatprep.mubr.f32.mxu0 0.0
      %491 = vmatmul.mubr.f32.gmra.mrb[0].mxu0 %v303
      %v492 = vpop.f32.mrb[0].mxu0
      %v493 = vadd.f32 %v263, %v492
      %v494 = vpop.f32.mrb[0].mxu0
      %495 = vmatprep.mubr.f32.mxu0 0.0
      %496 = vmatmul.mubr.f32.gmra.mrb[0].mxu0 %v306
      %v497 = vpop.f32.mrb[0].mxu0
      %v498 = vadd.f32 %v263, %v497
      %v499 = vpop.f32.mrb[0].mxu0
      %500 = vmatprep.mubr.f32.mxu0 0.0
      %501 = vmatmul.mubr.f32.gmra.mrb[0].mxu0 %v309
      %v502 = vpop.f32.mrb[0].mxu0
      %v503 = vadd.f32 %v263, %v502
      %v504 = vpop.f32.mrb[0].mxu0
      %505 = vmatprep.mubr.f32.mxu0 0.0
      %506 = vmatmul.mubr.f32.gmra.mrb[0].mxu0 %v312
      %v507 = vpop.f32.mrb[0].mxu0
      %v508 = vadd.f32 %v263, %v507
      %v509 = vpop.f32.mrb[0].mxu0
      %510 = vmatprep.mubr.f32.mxu0 0.0
      %511 = vmatmul.mubr.f32.gmra.mrb[0].mxu0 %v315
      %v512 = vpop.f32.mrb[0].mxu0
      %v513 = vadd.f32 %v263, %v512
      %v514 = vpop.f32.mrb[0].mxu0
      %515 = vmatprep.mubr.f32.mxu0 0.0
      %516 = vmatmul.mubr.f32.gmra.mrb[0].mxu0 %v318
      %v517 = vpop.f32.mrb[0].mxu0
      %v518 = vadd.f32 %v263, %v517
      %v519 = vpop.f32.mrb[0].mxu0
      %520 = vmatprep.mubr.f32.mxu0 0.0
      %521 = vmatmul.mubr.f32.gmra.mrb[0].mxu0 %v321
      %v522 = vpop.f32.mrb[0].mxu0
      %v523 = vadd.f32 %v263, %v522
      %v524 = vpop.f32.mrb[0].mxu0
      %525 = vmatprep.mubr.f32.mxu0 0.0
      %526 = vmatmul.mubr.f32.gmra.mrb[0].mxu0 %v324
      %v527 = vpop.f32.mrb[0].mxu0
      %v528 = vadd.f32 %v263, %v527
      %v529 = vpop.f32.mrb[0].mxu0
      %530 = vmatprep.mubr.f32.mxu0 0.0
      %531 = vmatmul.mubr.f32.gmra.mrb[0].mxu0 %v327
      %v532 = vpop.f32.mrb[0].mxu0
      %v533 = vadd.f32 %v263, %v532
      %v534 = vpop.f32.mrb[0].mxu0
      %535 = vmatprep.mubr.f32.mxu0 0.0
      %536 = vmatmul.mubr.f32.gmra.mrb[0].mxu0 %v330
      %v537 = vpop.f32.mrb[0].mxu0
      %v538 = vadd.f32 %v263, %v537
      %v539 = vpop.f32.mrb[0].mxu0
      %540 = vmatprep.mubr.f32.mxu0 0.0
      %541 = vmatmul.mubr.f32.gmra.mrb[0].mxu0 %v333
      %v542 = vpop.f32.mrb[0].mxu0
      %v543 = vadd.f32 %v263, %v542
      %v544 = vpop.f32.mrb[0].mxu0
      %545 = vmatprep.mubr.f32.mxu0 0.0
      %546 = vmatmul.mubr.f32.gmra.mrb[0].mxu0 %v336
      %v547 = vpop.f32.mrb[0].mxu0
      %v548 = vadd.f32 %v263, %v547
      %v549 = vpop.f32.mrb[0].mxu0
      %550 = vmatprep.mubr.f32.mxu0 0.0
      %551 = vmatmul.mubr.f32.gmra.mrb[0].mxu0 %v339
      %v552 = vpop.f32.mrb[0].mxu0
      %v553 = vadd.f32 %v263, %v552
      %v554 = vpop.f32.mrb[0].mxu0
      %555 = vmatprep.mubr.f32.mxu0 0.0
      %556 = vmatmul.mubr.f32.gmra.mrb[0].mxu0 %v342
      %v557 = vpop.f32.mrb[0].mxu0
      %v558 = vadd.f32 %v263, %v557
      %v559 = vpop.f32.mrb[0].mxu0
      %560 = vmatprep.mubr.f32.mxu0 0.0
      %561 = vmatmul.mubr.f32.gmra.mrb[0].mxu0 %v345
      %v562 = vpop.f32.mrb[0].mxu0
      %v563 = vadd.f32 %v263, %v562
      %v564 = vpop.f32.mrb[0].mxu0
      %565 = vmatprep.mubr.f32.mxu0 0.0
      %566 = vmatmul.mubr.f32.gmra.mrb[0].mxu0 %v348
      %v567 = vpop.f32.mrb[0].mxu0
      %v568 = vadd.f32 %v263, %v567
      %v569 = vpop.f32.mrb[0].mxu0
      %570 = vmatprep.mubr.f32.mxu0 0.0
      %571 = vmatmul.mubr.f32.gmra.mrb[0].mxu0 %v351
      %v572 = vpop.f32.mrb[0].mxu0
      %v573 = vadd.f32 %v263, %v572
      %v574 = vpop.f32.mrb[0].mxu0
      %575 = vmatprep.mubr.f32.mxu0 0.0
      %576 = vmatmul.mubr.f32.gmra.mrb[0].mxu0 %v354
      %v577 = vpop.f32.mrb[0].mxu0
      %v578 = vadd.f32 %v263, %v577
      %v579 = vpop.f32.mrb[0].mxu0
      %580 = vmatprep.mubr.f32.mxu0 0.0
      %581 = vmatmul.mubr.f32.gmra.mrb[0].mxu0 %v357
      %v582 = vpop.f32.mrb[0].mxu0
      %v583 = vadd.f32 %v263, %v582
      %v584 = vpop.f32.mrb[0].mxu0
      %585 = vmatprep.mubr.f32.mxu0 0.0
      %586 = vmatmul.mubr.f32.gmra.mrb[0].mxu0 %v360
      %v587 = vpop.f32.mrb[0].mxu0
      %v588 = vadd.f32 %v263, %v587
      %v589 = vpop.f32.mrb[0].mxu0
      %590 = vdwg.mxu0
      %v591 = vmax.f32 %v433, 0.0
      %v592 = vmax.f32 %v438, 0.0
      %v593 = vmax.f32 %v443, 0.0
      %v594 = vmax.f32 %v448, 0.0
      %v595 = vmax.f32 %v453, 0.0
      %v596 = vmax.f32 %v458, 0.0
      %v597 = vmax.f32 %v463, 0.0
      %v598 = vmax.f32 %v468, 0.0
      %v599 = vmax.f32 %v473, 0.0
      %v600 = vmax.f32 %v478, 0.0
      %v601 = vmax.f32 %v483, 0.0
      %v602 = vmax.f32 %v488, 0.0
      %v603 = vmax.f32 %v493, 0.0
      %v604 = vmax.f32 %v498, 0.0
      %v605 = vmax.f32 %v503, 0.0
      %v606 = vmax.f32 %v508, 0.0
      %v607 = vmax.f32 %v513, 0.0
      %v608 = vmax.f32 %v518, 0.0
      %v609 = vmax.f32 %v523, 0.0
      %v610 = vmax.f32 %v528, 0.0
      %v611 = vmax.f32 %v533, 0.0
      %v612 = vmax.f32 %v538, 0.0
      %v613 = vmax.f32 %v543, 0.0
      %v614 = vmax.f32 %v548, 0.0
      %v615 = vmax.f32 %v553, 0.0
      %v616 = vmax.f32 %v558, 0.0
      %v617 = vmax.f32 %v563, 0.0
      %v618 = vmax.f32 %v568, 0.0
      %v619 = vmax.f32 %v573, 0.0
      %v620 = vmax.f32 %v578, 0.0
      %v621 = vmax.f32 %v583, 0.0
      %v622 = vmax.f32 %v588, 0.0
      %vm623 = vcmask 64512
      %624 = vst.msk [vmem:[%s223] sm:$0xff] %vm623, %v591
      %625 = vst.msk [vmem:[%s223 + $0x8] sm:$0xff] %vm623, %v592
      %626 = vst.msk [vmem:[%s223 + $0x10] sm:$0xff] %vm623, %v593
      %627 = vst.msk [vmem:[%s223 + $0x18] sm:$0xff] %vm623, %v594
      %628 = vst.msk [vmem:[%s223 + $0x20] sm:$0xff] %vm623, %v595
      %629 = vst.msk [vmem:[%s223 + $0x28] sm:$0xff] %vm623, %v596
      %630 = vst.msk [vmem:[%s223 + $0x30] sm:$0xff] %vm623, %v597
      %631 = vst.msk [vmem:[%s223 + $0x38] sm:$0xff] %vm623, %v598
      %632 = vst.msk [vmem:[%s223 + $0x40] sm:$0xff] %vm623, %v599
      %633 = vst.msk [vmem:[%s223 + $0x48] sm:$0xff] %vm623, %v600
      %634 = vst.msk [vmem:[%s223 + $0x50] sm:$0xff] %vm623, %v601
      %635 = vst.msk [vmem:[%s223 + $0x58] sm:$0xff] %vm623, %v602
      %636 = vst.msk [vmem:[%s223 + $0x60] sm:$0xff] %vm623, %v603
      %637 = vst.msk [vmem:[%s223 + $0x68] sm:$0xff] %vm623, %v604
      %638 = vst.msk [vmem:[%s223 + $0x70] sm:$0xff] %vm623, %v605
      %639 = vst.msk [vmem:[%s223 + $0x78] sm:$0xff] %vm623, %v606
      %640 = vst.msk [vmem:[%s223 + $0x80] sm:$0xff] %vm623, %v607
      %641 = vst.msk [vmem:[%s223 + $0x88] sm:$0xff] %vm623, %v608
      %642 = vst.msk [vmem:[%s223 + $0x90] sm:$0xff] %vm623, %v609
      %643 = vst.msk [vmem:[%s223 + $0x98] sm:$0xff] %vm623, %v610
      %644 = vst.msk [vmem:[%s223 + $0xa0] sm:$0xff] %vm623, %v611
      %645 = vst.msk [vmem:[%s223 + $0xa8] sm:$0xff] %vm623, %v612
      %646 = vst.msk [vmem:[%s223 + $0xb0] sm:$0xff] %vm623, %v613
      %647 = vst.msk [vmem:[%s223 + $0xb8] sm:$0xff] %vm623, %v614
      %648 = vst.msk [vmem:[%s223 + $0xc0] sm:$0xff] %vm623, %v615
      %649 = vst.msk [vmem:[%s223 + $0xc8] sm:$0xff] %vm623, %v616
      %650 = vst.msk [vmem:[%s223 + $0xd0] sm:$0xff] %vm623, %v617
      %651 = vst.msk [vmem:[%s223 + $0xd8] sm:$0xff] %vm623, %v618
      %652 = vst.msk [vmem:[%s223 + $0xe0] sm:$0xff] %vm623, %v619
      %653 = vst.msk [vmem:[%s223 + $0xe8] sm:$0xff] %vm623, %v620
      %654 = vst.msk [vmem:[%s223 + $0xf0] sm:$0xff] %vm623, %v621
      %655 = vst.msk [vmem:[%s223 + $0xf8] sm:$0xff] %vm623, %v622
      %s656 = smul.u32 32, %s18
      %p657 = scmp.lt.s32.totalorder %s656, 63
      %s658 = scalar_select %p657, %s656, 63
      %p659 = scmp.lt.s32.totalorder %s19, 0
      %s660 = scalar_select %p659, %s19, 0
      %s661 = sadd.s32 %s660, %s658
      %s662 = smul.addr %s661, 8
      %s663 = scalar_lea.vmem %s3, %s662
      // Predicated region
      $region33: #{conv_block_nhwc.1} parent=31 // pred_check
        %p664 = pneg %p124
      $region34: #{conv_block_nhwc.1} parent=31 // pred_check_branch
        %666 = sbr.rel (%p664) target = $region36
      $region35: #{conv_block_nhwc.1} parent=31 // pred_region
        %s667 = smul.u32 32, %s18
      $region36: #{conv_block_nhwc.1} parent=31 // pred_fallthru
        _
    $region32: #{conv_block_nhwc.1} parent=5 // pred_fallthru
      _
    %p668 = scmp.le.s32.totalorder 2, %s9
    // Predicated region
    $region37: #{conv_block_nhwc.1} parent=5 // pred_check
      %p669 = pneg %p668
    $region38: #{conv_block_nhwc.1} parent=5 // pred_check_branch
      %671 = sbr.rel (%p669) target = $region40
    $region39: #{conv_block_nhwc.1} parent=5 // pred_region
      %s672 = ssub.s32 %s9, 2
      // Predicated region
      $region41: #{conv_block_nhwc.1} parent=39 // pred_check
        %p673 = pneg %p130
      $region42: #{conv_block_nhwc.1} parent=39 // pred_check_branch
        %675 = sbr.rel (%p673) target = $region44
      $region43: #{conv_block_nhwc.1} parent=39 // pred_region
        %s676 = smul.u32 32, %s20
        %p677 = scmp.lt.s32.totalorder %s676, 63
        %s678 = scalar_select %p677, %s676, 63
        %p679 = scmp.lt.s32.totalorder %s21, 0
        %s680 = scalar_select %p679, %s21, 0
        %s681 = sadd.s32 %s680, %s678
        %s682 = smul.addr %s681, 8
        %s683 = scalar_lea.vmem %s3, %s682
      $region44: #{conv_block_nhwc.1} parent=39 // pred_fallthru
        _
    $region40: #{conv_block_nhwc.1} parent=5 // pred_fallthru
      _
  $region6: #{conv_block_nhwc.1} parent=0 // loop_footer
    %s13 = sadd.s32 1, %s9
  $region7: #{conv_block_nhwc.1} parent=0 // loop_footer_branch
    %8 = sbr.rel target = $region3
  $region8: #{conv_block_nhwc.1} parent=0 // loop_exit
    _

</llo_original>
